<compile_context>
chip_gen: v5e
topology: v5e:2x2
jax: 0.10.0
libtpu: 0.0.40
codegen_flags: <defaults>
</compile_context>

<pallas_src>
import functools

import jax
import jax.numpy as jnp
from jax.experimental import pallas as pl
from jax.experimental.pallas import tpu as pltpu


def _round_up(x, m):
    return (x + m - 1) // m * m


def _pick_row_tile(n, target):
    """Largest multiple of 8 <= target that divides n (falls back to n)."""
    tm = min(target, n)
    tm -= tm % 8
    while tm >= 8:
        if n % tm == 0:
            return tm
        tm -= 8
    return n


# ----------------------------- Pallas kernel ------------------------------

def _fused_view_kernel(tails_ref, nbr1_ref, nbr2_ref,           # SMEM prefetch
                       feature_ref, adj_ref, w12_ref, w_gc_ref, b_gc_ref,
                       out_ref,
                       xw_s, xwb_s, tail_s, nbr_s):
    i = pl.program_id(0)            # view index
    j = pl.program_id(1)            # row block within the view
    T = tails_ref.shape[1]

    @pl.when(j == 0)
    def _produce_xw():
        # Base XW for all rows (F << N => tiny fraction of the adj@XW work).
        xw_s[...] = jnp.dot(feature_ref[...], w_gc_ref[...],
                            preferred_element_type=jnp.float32)

        # Gather tail / neighbor rows (unrolled; T is small).
        # TODO(synk): for T >> 16 switch to a one-hot MXU gather.
        for t in range(T):
            ti = tails_ref[i, t]
            n1 = nbr1_ref[i, t]
            n2 = nbr2_ref[i, t]
            tail_s[pl.ds(t, 1), :] = feature_ref[pl.ds(ti, 1), :]
            nbr_s[pl.ds(t, 1), :] = 0.5 * (feature_ref[pl.ds(n1, 1), :]
                                           + feature_ref[pl.ds(n2, 1), :])
        tail = tail_s[...]                                          # (T, F)
        nbr_mean = nbr_s[...]                                       # (T, F)

        # gate = sigmoid(tail @ (W1@W2)): VPU multiply + lane reduction.
        # TODO(synk): valid only if DynamicSmote has no nonlinearity between
        #             its two projections; otherwise split into two matmuls.
        gate = jax.nn.sigmoid(
            jnp.sum(tail * w12_ref[...], axis=-1, keepdims=True))   # (T, 1)
        new_tail = tail + gate * (nbr_mean - tail)                  # (T, F)

        # Only the T modified rows go back through the MXU ...
        new_xw = jnp.dot(new_tail, w_gc_ref[...],
                         preferred_element_type=jnp.float32)        # (T, Hp)

        # ... and are scattered with dynamic row stores.  The unrolled loop is
        # sequential => last-write-wins for duplicate tails (matches a
        # sequential PyTorch reference).  O(T*H) instead of O(T*N*H).
        for t in range(T):
            ti = tails_ref[i, t]
            xw_s[pl.ds(ti, 1), :] = new_xw[t:t + 1, :]

        # One whole-matrix cast per VIEW (not per row block): bf16 copy feeds
        # the MXU so the dominant matmul runs bf16 x bf16 with f32 accumulate.
        # (f32 scratch keeps the dynamic row scatter on the safe store path.)
        xwb_s[...] = xw_s[...].astype(xwb_s.dtype)

    # Tiled GCN layer: relu(adj[rows] @ XW + b); f32 bias/ReLU epilogue
    # (v5e VPU has no bf16), single lane-dense (TM, Hp) store.
    h = jnp.dot(adj_ref[...], xwb_s[...],
                preferred_element_type=jnp.float32) + b_gc_ref[...]
    out_ref[...] = jnp.maximum(h, 0.0)


# ------------------------------- wrapper -----------------------------------

def smote_hg_forward(feature, adj_stack, chosen_tails, first_nbrs, second_nbrs,
                     params, *, tm=256):
    """feature: [N, F] f32; adj_stack: [L, N, N] (bf16 preferred — cast once at
    model setup); index arrays: [L, T] int32.  Returns [L, N, H] f32."""
    L, T = chosen_tails.shape
    N, F = feature.shape
    H = params["w_gc"].shape[1]

    # Lane-dense output: pad the hidden dim to a multiple of 128 with zeros.
    Hp = max(128, _round_up(H, 128))
    w_gc = jnp.zeros((F, Hp), jnp.float32).at[:, :H].set(
        params["w_gc"].astype(jnp.float32))
    b_gc = jnp.zeros((1, Hp), jnp.float32).at[:, :H].set(
        params["b_gc"].reshape(1, H).astype(jnp.float32))

    # No nonlinearity between the SMOTE projections => collapse to (1, F).
    w12 = (params["w1"] @ params["w2"]).reshape(1, F).astype(jnp.float32)

    # bf16 MXU feed for the dominant operand (no-op if already cast at setup).
    adj_bf16 = (adj_stack if adj_stack.dtype == jnp.bfloat16
                else adj_stack.astype(jnp.bfloat16))

    TM = _pick_row_tile(N, tm)
    R = N // TM

    # Scoped-VMEM sizing: double buffers for streamed operands + resident
    # scratch.  Re-derive `tm` per generation (v7x has only 64 MiB VMEM).
    vmem_est = (2 * TM * N * 2            # adj tile double buffer (bf16)
                + 2 * TM * Hp * 4         # output tile double buffer (f32)
                + 2 * N * F * 4           # resident feature
                + 2 * F * Hp * 4          # W_gc
                + N * Hp * (4 + 2)        # XW scratch (f32 + bf16 copy)
                + 2 * T * F * 4           # gather scratch
                + (1 << 20))
    vmem_limit = int(max(32 * 2**20, min(2 * vmem_est, 112 * 2**20)))

    grid_spec = pltpu.PrefetchScalarGridSpec(
        num_scalar_prefetch=3,            # tails / first / second -> SMEM
        grid=(L, R),
        in_specs=[
            pl.BlockSpec((N, F), lambda i, j, *_: (0, 0)),            # feature
            pl.BlockSpec((None, TM, N), lambda i, j, *_: (i, j, 0)),  # adj rows
            pl.BlockSpec((1, F), lambda i, j, *_: (0, 0)),            # W1@W2
            pl.BlockSpec((F, Hp), lambda i, j, *_: (0, 0)),           # W_gc
            pl.BlockSpec((1, Hp), lambda i, j, *_: (0, 0)),           # b_gc
        ],
        out_specs=pl.BlockSpec((None, TM, Hp), lambda i, j, *_: (i, j, 0)),
        scratch_shapes=[
            pltpu.VMEM((N, Hp), jnp.float32),     # XW (f32, scatter target)
            pltpu.VMEM((N, Hp), jnp.bfloat16),    # XW (bf16 MXU copy)
            pltpu.VMEM((T, F), jnp.float32),      # gathered tail rows
            pltpu.VMEM((T, F), jnp.float32),      # gathered neighbor means
        ],
    )

    cost = pl.CostEstimate(
        flops=int(2 * L * N * N * Hp + 2 * L * (N + T) * F * Hp),
        transcendentals=int(L * T),
        bytes_accessed=int(L * N * N * 2 + N * F * 4 + L * N * Hp * 4),
    )

    embeds_padded = pl.pallas_call(
        _fused_view_kernel,
        out_shape=jax.ShapeDtypeStruct((L, N, Hp), jnp.float32),
        grid_spec=grid_spec,
        compiler_params=pltpu.CompilerParams(
            # Views shard across megacore TCs; row blocks run sequentially so
            # the per-view XW scratch (built at row block 0) is reused.
            dimension_semantics=("parallel", "arbitrary"),
            vmem_limit_bytes=vmem_limit),
        cost_estimate=cost,
    )(chosen_tails, first_nbrs, second_nbrs,
      feature, adj_bf16, w12, w_gc, b_gc)

    return embeds_padded[:, :, :H]        # [L, N, H]


# --------------------------------- main ------------------------------------

if __name__ == "__main__":
    key = jax.random.PRNGKey(0)
    N, F, Hd, H = 32, 16, 32, 32     # nodes, fea_dim, smote hid, gcn hid
    L, T = 2, 8                      # number of views, chosen tails per view

    k_feat, k_adj, k_w1, k_w2, k_wg, k_idx = jax.random.split(key, 6)

    feature = jax.random.normal(k_feat, (N, F), dtype=jnp.float32)

    # Random symmetric, self-loop, row-normalized adjacency per view.
    a = jax.random.uniform(k_adj, (L, N, N)) < 0.15
    a = a | jnp.transpose(a, (0, 2, 1)) | jnp.eye(N, dtype=bool)[None]
    adj = a.astype(jnp.float32)
    adj = adj / jnp.sum(adj, axis=-1, keepdims=True)
    # Cast the dominant MXU operand ONCE at setup (hoisted out of forward).
    adj_bf16 = adj.astype(jnp.bfloat16)

    w1 = 0.1 * jax.random.normal(k_w1, (F, Hd), dtype=jnp.float32)
    w2 = 0.1 * jax.random.normal(k_w2, (Hd, 1), dtype=jnp.float32)
    w_gc = 0.1 * jax.random.normal(k_wg, (F, H), dtype=jnp.float32)
    b_gc = jnp.zeros((1, H), dtype=jnp.float32)
    params = {"w1": w1, "w2": w2, "w_gc": w_gc, "b_gc": b_gc}

    # Synthetic chosen-tail / neighbor index lists per view.
    idx = jax.random.randint(k_idx, (3, L, T), 0, N, dtype=jnp.int32)
    chosen_tails, first_nbrs, second_nbrs = idx[0], idx[1], idx[2]

    # tm=16 at this toy N=32 exercises the row-tiled path (grid = (L=2, R=2)).
    fwd = jax.jit(functools.partial(smote_hg_forward, tm=16))
    embed_ds = fwd(feature, adj_bf16, chosen_tails, first_nbrs, second_nbrs,
                   params)
    jax.block_until_ready(embed_ds)
    assert embed_ds.shape == (L, N, H)
    print("KERNEL_OK")
</pallas_src>

<mosaic_0001>
module attributes {stable_mosaic.version = 11 : i64} {
  func.func @_fused_view_kernel(%arg0: i32, %arg1: i32, %arg2: memref<2x8xi32, #tpu.memory_space<smem>>, %arg3: memref<2x8xi32, #tpu.memory_space<smem>>, %arg4: memref<2x8xi32, #tpu.memory_space<smem>>, %arg5: memref<32x16xf32, #tpu.memory_space<vmem>>, %arg6: memref<1x16x32xbf16, #tpu.memory_space<vmem>>, %arg7: memref<1x16xf32, #tpu.memory_space<vmem>>, %arg8: memref<16x128xf32, #tpu.memory_space<vmem>>, %arg9: memref<1x128xf32, #tpu.memory_space<vmem>>, %arg10: memref<1x16x128xf32, #tpu.memory_space<vmem>>, %arg11: memref<32x128xf32, #tpu.memory_space<vmem>>, %arg12: memref<32x128xbf16, #tpu.memory_space<vmem>>, %arg13: memref<8x16xf32, #tpu.memory_space<vmem>>, %arg14: memref<8x16xf32, #tpu.memory_space<vmem>>) attributes {dimension_semantics = [#tpu.dimension_semantics<parallel>, #tpu.dimension_semantics<arbitrary>], iteration_bounds = array<i64: 2, 2>, scalar_prefetch = 3 : i64, scratch_operands = 4 : i64, tpu.core_type = #tpu.core_type<tc>, window_params = [{pipeline_mode = #tpu.pipeline_mode<synchronous>, transform_indices = @transform_0, window_bounds = array<i64: 32, 16>}, {transform_indices = @transform_1, window_bounds = array<i64: 1, 16, 32>}, {pipeline_mode = #tpu.pipeline_mode<synchronous>, transform_indices = @transform_2, window_bounds = array<i64: 1, 16>}, {pipeline_mode = #tpu.pipeline_mode<synchronous>, transform_indices = @transform_3, window_bounds = array<i64: 16, 128>}, {pipeline_mode = #tpu.pipeline_mode<synchronous>, transform_indices = @transform_4, window_bounds = array<i64: 1, 128>}, {transform_indices = @transform_5, window_bounds = array<i64: 1, 16, 128>}]} {
    %c0_i32 = arith.constant 0 : i32
    %0 = arith.cmpi eq, %arg1, %c0_i32 : i32
    %1 = arith.extui %0 : i1 to i32
    %c0_i32_0 = arith.constant 0 : i32
    %2 = arith.cmpi ne, %1, %c0_i32_0 : i32
    scf.if %2 {
      %c0_11 = arith.constant 0 : index
      %c0_12 = arith.constant 0 : index
      %15 = vector.load %arg5[%c0_11, %c0_12] : memref<32x16xf32, #tpu.memory_space<vmem>>, vector<32x16xf32>
      %c0_13 = arith.constant 0 : index
      %c0_14 = arith.constant 0 : index
      %16 = vector.load %arg8[%c0_13, %c0_14] : memref<16x128xf32, #tpu.memory_space<vmem>>, vector<16x128xf32>
      %cst_15 = arith.constant dense<0.000000e+00> : vector<32x128xf32>
      %17 = tpu.matmul %15, %16, %cst_15 {dimension_numbers = #tpu.dot_dimension_numbers<[1], [0], [0], [1], [0, 0, 1, 1], [], []>} : vector<32x16xf32>, vector<16x128xf32>, vector<32x128xf32> -> vector<32x128xf32>
      %c0_16 = arith.constant 0 : index
      %c0_17 = arith.constant 0 : index
      %18 = vector.load %arg11[%c0_16, %c0_17] : memref<32x128xf32, #tpu.memory_space<vmem>>, vector<32x128xf32>
      tpu.vector_store %arg11[%c0_16, %c0_17], %17 {strides = array<i32>} : memref<32x128xf32, #tpu.memory_space<vmem>>, vector<32x128xf32>,
      %19 = arith.index_cast %arg0 : i32 to index
      %c0_18 = arith.constant 0 : index
      %20 = memref.load %arg2[%19, %c0_18] : memref<2x8xi32, #tpu.memory_space<smem>>
      %21 = arith.index_cast %arg0 : i32 to index
      %c0_19 = arith.constant 0 : index
      %22 = memref.load %arg3[%21, %c0_19] : memref<2x8xi32, #tpu.memory_space<smem>>
      %23 = arith.index_cast %arg0 : i32 to index
      %c0_20 = arith.constant 0 : index
      %24 = memref.load %arg4[%23, %c0_20] : memref<2x8xi32, #tpu.memory_space<smem>>
      %25 = arith.index_cast %20 : i32 to index
      %c0_21 = arith.constant 0 : index
      %26 = vector.load %arg5[%25, %c0_21] : memref<32x16xf32, #tpu.memory_space<vmem>>, vector<1x16xf32>
      %c0_22 = arith.constant 0 : index
      %c0_23 = arith.constant 0 : index
      %27 = vector.load %arg13[%c0_22, %c0_23] : memref<8x16xf32, #tpu.memory_space<vmem>>, vector<1x16xf32>
      tpu.vector_store %arg13[%c0_22, %c0_23], %26 {strides = array<i32>} : memref<8x16xf32, #tpu.memory_space<vmem>>, vector<1x16xf32>,
      %28 = arith.index_cast %22 : i32 to index
      %c0_24 = arith.constant 0 : index
      %29 = vector.load %arg5[%28, %c0_24] : memref<32x16xf32, #tpu.memory_space<vmem>>, vector<1x16xf32>
      %30 = arith.index_cast %24 : i32 to index
      %c0_25 = arith.constant 0 : index
      %31 = vector.load %arg5[%30, %c0_25] : memref<32x16xf32, #tpu.memory_space<vmem>>, vector<1x16xf32>
      %32 = arith.addf %29, %31 : vector<1x16xf32>
      %cst_26 = arith.constant 5.000000e-01 : f32
      %33 = vector.broadcast %cst_26 : f32 to vector<1x16xf32>
      %34 = arith.mulf %33, %32 : vector<1x16xf32>
      %c0_27 = arith.constant 0 : index
      %c0_28 = arith.constant 0 : index
      %35 = vector.load %arg14[%c0_27, %c0_28] : memref<8x16xf32, #tpu.memory_space<vmem>>, vector<1x16xf32>
      tpu.vector_store %arg14[%c0_27, %c0_28], %34 {strides = array<i32>} : memref<8x16xf32, #tpu.memory_space<vmem>>, vector<1x16xf32>,
      %36 = arith.index_cast %arg0 : i32 to index
      %c1 = arith.constant 1 : index
      %37 = memref.load %arg2[%36, %c1] : memref<2x8xi32, #tpu.memory_space<smem>>
      %38 = arith.index_cast %arg0 : i32 to index
      %c1_29 = arith.constant 1 : index
      %39 = memref.load %arg3[%38, %c1_29] : memref<2x8xi32, #tpu.memory_space<smem>>
      %40 = arith.index_cast %arg0 : i32 to index
      %c1_30 = arith.constant 1 : index
      %41 = memref.load %arg4[%40, %c1_30] : memref<2x8xi32, #tpu.memory_space<smem>>
      %42 = arith.index_cast %37 : i32 to index
      %c0_31 = arith.constant 0 : index
      %43 = vector.load %arg5[%42, %c0_31] : memref<32x16xf32, #tpu.memory_space<vmem>>, vector<1x16xf32>
      %c1_32 = arith.constant 1 : index
      %c0_33 = arith.constant 0 : index
      %44 = vector.load %arg13[%c1_32, %c0_33] : memref<8x16xf32, #tpu.memory_space<vmem>>, vector<1x16xf32>
      tpu.vector_store %arg13[%c1_32, %c0_33], %43 {strides = array<i32>} : memref<8x16xf32, #tpu.memory_space<vmem>>, vector<1x16xf32>,
      %45 = arith.index_cast %39 : i32 to index
      %c0_34 = arith.constant 0 : index
      %46 = vector.load %arg5[%45, %c0_34] : memref<32x16xf32, #tpu.memory_space<vmem>>, vector<1x16xf32>
      %47 = arith.index_cast %41 : i32 to index
      %c0_35 = arith.constant 0 : index
      %48 = vector.load %arg5[%47, %c0_35] : memref<32x16xf32, #tpu.memory_space<vmem>>, vector<1x16xf32>
      %49 = arith.addf %46, %48 : vector<1x16xf32>
      %cst_36 = arith.constant 5.000000e-01 : f32
      %50 = vector.broadcast %cst_36 : f32 to vector<1x16xf32>
      %51 = arith.mulf %50, %49 : vector<1x16xf32>
      %c1_37 = arith.constant 1 : index
      %c0_38 = arith.constant 0 : index
      %52 = vector.load %arg14[%c1_37, %c0_38] : memref<8x16xf32, #tpu.memory_space<vmem>>, vector<1x16xf32>
      tpu.vector_store %arg14[%c1_37, %c0_38], %51 {strides = array<i32>} : memref<8x16xf32, #tpu.memory_space<vmem>>, vector<1x16xf32>,
      %53 = arith.index_cast %arg0 : i32 to index
      %c2 = arith.constant 2 : index
      %54 = memref.load %arg2[%53, %c2] : memref<2x8xi32, #tpu.memory_space<smem>>
      %55 = arith.index_cast %arg0 : i32 to index
      %c2_39 = arith.constant 2 : index
      %56 = memref.load %arg3[%55, %c2_39] : memref<2x8xi32, #tpu.memory_space<smem>>
      %57 = arith.index_cast %arg0 : i32 to index
      %c2_40 = arith.constant 2 : index
      %58 = memref.load %arg4[%57, %c2_40] : memref<2x8xi32, #tpu.memory_space<smem>>
      %59 = arith.index_cast %54 : i32 to index
      %c0_41 = arith.constant 0 : index
      %60 = vector.load %arg5[%59, %c0_41] : memref<32x16xf32, #tpu.memory_space<vmem>>, vector<1x16xf32>
      %c2_42 = arith.constant 2 : index
      %c0_43 = arith.constant 0 : index
      %61 = vector.load %arg13[%c2_42, %c0_43] : memref<8x16xf32, #tpu.memory_space<vmem>>, vector<1x16xf32>
      tpu.vector_store %arg13[%c2_42, %c0_43], %60 {strides = array<i32>} : memref<8x16xf32, #tpu.memory_space<vmem>>, vector<1x16xf32>,
      %62 = arith.index_cast %56 : i32 to index
      %c0_44 = arith.constant 0 : index
      %63 = vector.load %arg5[%62, %c0_44] : memref<32x16xf32, #tpu.memory_space<vmem>>, vector<1x16xf32>
      %64 = arith.index_cast %58 : i32 to index
      %c0_45 = arith.constant 0 : index
      %65 = vector.load %arg5[%64, %c0_45] : memref<32x16xf32, #tpu.memory_space<vmem>>, vector<1x16xf32>
      %66 = arith.addf %63, %65 : vector<1x16xf32>
      %cst_46 = arith.constant 5.000000e-01 : f32
      %67 = vector.broadcast %cst_46 : f32 to vector<1x16xf32>
      %68 = arith.mulf %67, %66 : vector<1x16xf32>
      %c2_47 = arith.constant 2 : index
      %c0_48 = arith.constant 0 : index
      %69 = vector.load %arg14[%c2_47, %c0_48] : memref<8x16xf32, #tpu.memory_space<vmem>>, vector<1x16xf32>
      tpu.vector_store %arg14[%c2_47, %c0_48], %68 {strides = array<i32>} : memref<8x16xf32, #tpu.memory_space<vmem>>, vector<1x16xf32>,
      %70 = arith.index_cast %arg0 : i32 to index
      %c3 = arith.constant 3 : index
      %71 = memref.load %arg2[%70, %c3] : memref<2x8xi32, #tpu.memory_space<smem>>
      %72 = arith.index_cast %arg0 : i32 to index
      %c3_49 = arith.constant 3 : index
      %73 = memref.load %arg3[%72, %c3_49] : memref<2x8xi32, #tpu.memory_space<smem>>
      %74 = arith.index_cast %arg0 : i32 to index
      %c3_50 = arith.constant 3 : index
      %75 = memref.load %arg4[%74, %c3_50] : memref<2x8xi32, #tpu.memory_space<smem>>
      %76 = arith.index_cast %71 : i32 to index
      %c0_51 = arith.constant 0 : index
      %77 = vector.load %arg5[%76, %c0_51] : memref<32x16xf32, #tpu.memory_space<vmem>>, vector<1x16xf32>
      %c3_52 = arith.constant 3 : index
      %c0_53 = arith.constant 0 : index
      %78 = vector.load %arg13[%c3_52, %c0_53] : memref<8x16xf32, #tpu.memory_space<vmem>>, vector<1x16xf32>
      tpu.vector_store %arg13[%c3_52, %c0_53], %77 {strides = array<i32>} : memref<8x16xf32, #tpu.memory_space<vmem>>, vector<1x16xf32>,
      %79 = arith.index_cast %73 : i32 to index
      %c0_54 = arith.constant 0 : index
      %80 = vector.load %arg5[%79, %c0_54] : memref<32x16xf32, #tpu.memory_space<vmem>>, vector<1x16xf32>
      %81 = arith.index_cast %75 : i32 to index
      %c0_55 = arith.constant 0 : index
      %82 = vector.load %arg5[%81, %c0_55] : memref<32x16xf32, #tpu.memory_space<vmem>>, vector<1x16xf32>
      %83 = arith.addf %80, %82 : vector<1x16xf32>
      %cst_56 = arith.constant 5.000000e-01 : f32
      %84 = vector.broadcast %cst_56 : f32 to vector<1x16xf32>
      %85 = arith.mulf %84, %83 : vector<1x16xf32>
      %c3_57 = arith.constant 3 : index
      %c0_58 = arith.constant 0 : index
      %86 = vector.load %arg14[%c3_57, %c0_58] : memref<8x16xf32, #tpu.memory_space<vmem>>, vector<1x16xf32>
      tpu.vector_store %arg14[%c3_57, %c0_58], %85 {strides = array<i32>} : memref<8x16xf32, #tpu.memory_space<vmem>>, vector<1x16xf32>,
      %87 = arith.index_cast %arg0 : i32 to index
      %c4 = arith.constant 4 : index
      %88 = memref.load %arg2[%87, %c4] : memref<2x8xi32, #tpu.memory_space<smem>>
      %89 = arith.index_cast %arg0 : i32 to index
      %c4_59 = arith.constant 4 : index
      %90 = memref.load %arg3[%89, %c4_59] : memref<2x8xi32, #tpu.memory_space<smem>>
      %91 = arith.index_cast %arg0 : i32 to index
      %c4_60 = arith.constant 4 : index
      %92 = memref.load %arg4[%91, %c4_60] : memref<2x8xi32, #tpu.memory_space<smem>>
      %93 = arith.index_cast %88 : i32 to index
      %c0_61 = arith.constant 0 : index
      %94 = vector.load %arg5[%93, %c0_61] : memref<32x16xf32, #tpu.memory_space<vmem>>, vector<1x16xf32>
      %c4_62 = arith.constant 4 : index
      %c0_63 = arith.constant 0 : index
      %95 = vector.load %arg13[%c4_62, %c0_63] : memref<8x16xf32, #tpu.memory_space<vmem>>, vector<1x16xf32>
      tpu.vector_store %arg13[%c4_62, %c0_63], %94 {strides = array<i32>} : memref<8x16xf32, #tpu.memory_space<vmem>>, vector<1x16xf32>,
      %96 = arith.index_cast %90 : i32 to index
      %c0_64 = arith.constant 0 : index
      %97 = vector.load %arg5[%96, %c0_64] : memref<32x16xf32, #tpu.memory_space<vmem>>, vector<1x16xf32>
      %98 = arith.index_cast %92 : i32 to index
      %c0_65 = arith.constant 0 : index
      %99 = vector.load %arg5[%98, %c0_65] : memref<32x16xf32, #tpu.memory_space<vmem>>, vector<1x16xf32>
      %100 = arith.addf %97, %99 : vector<1x16xf32>
      %cst_66 = arith.constant 5.000000e-01 : f32
      %101 = vector.broadcast %cst_66 : f32 to vector<1x16xf32>
      %102 = arith.mulf %101, %100 : vector<1x16xf32>
      %c4_67 = arith.constant 4 : index
      %c0_68 = arith.constant 0 : index
      %103 = vector.load %arg14[%c4_67, %c0_68] : memref<8x16xf32, #tpu.memory_space<vmem>>, vector<1x16xf32>
      tpu.vector_store %arg14[%c4_67, %c0_68], %102 {strides = array<i32>} : memref<8x16xf32, #tpu.memory_space<vmem>>, vector<1x16xf32>,
      %104 = arith.index_cast %arg0 : i32 to index
      %c5 = arith.constant 5 : index
      %105 = memref.load %arg2[%104, %c5] : memref<2x8xi32, #tpu.memory_space<smem>>
      %106 = arith.index_cast %arg0 : i32 to index
      %c5_69 = arith.constant 5 : index
      %107 = memref.load %arg3[%106, %c5_69] : memref<2x8xi32, #tpu.memory_space<smem>>
      %108 = arith.index_cast %arg0 : i32 to index
      %c5_70 = arith.constant 5 : index
      %109 = memref.load %arg4[%108, %c5_70] : memref<2x8xi32, #tpu.memory_space<smem>>
      %110 = arith.index_cast %105 : i32 to index
      %c0_71 = arith.constant 0 : index
      %111 = vector.load %arg5[%110, %c0_71] : memref<32x16xf32, #tpu.memory_space<vmem>>, vector<1x16xf32>
      %c5_72 = arith.constant 5 : index
      %c0_73 = arith.constant 0 : index
      %112 = vector.load %arg13[%c5_72, %c0_73] : memref<8x16xf32, #tpu.memory_space<vmem>>, vector<1x16xf32>
      tpu.vector_store %arg13[%c5_72, %c0_73], %111 {strides = array<i32>} : memref<8x16xf32, #tpu.memory_space<vmem>>, vector<1x16xf32>,
      %113 = arith.index_cast %107 : i32 to index
      %c0_74 = arith.constant 0 : index
      %114 = vector.load %arg5[%113, %c0_74] : memref<32x16xf32, #tpu.memory_space<vmem>>, vector<1x16xf32>
      %115 = arith.index_cast %109 : i32 to index
      %c0_75 = arith.constant 0 : index
      %116 = vector.load %arg5[%115, %c0_75] : memref<32x16xf32, #tpu.memory_space<vmem>>, vector<1x16xf32>
      %117 = arith.addf %114, %116 : vector<1x16xf32>
      %cst_76 = arith.constant 5.000000e-01 : f32
      %118 = vector.broadcast %cst_76 : f32 to vector<1x16xf32>
      %119 = arith.mulf %118, %117 : vector<1x16xf32>
      %c5_77 = arith.constant 5 : index
      %c0_78 = arith.constant 0 : index
      %120 = vector.load %arg14[%c5_77, %c0_78] : memref<8x16xf32, #tpu.memory_space<vmem>>, vector<1x16xf32>
      tpu.vector_store %arg14[%c5_77, %c0_78], %119 {strides = array<i32>} : memref<8x16xf32, #tpu.memory_space<vmem>>, vector<1x16xf32>,
      %121 = arith.index_cast %arg0 : i32 to index
      %c6 = arith.constant 6 : index
      %122 = memref.load %arg2[%121, %c6] : memref<2x8xi32, #tpu.memory_space<smem>>
      %123 = arith.index_cast %arg0 : i32 to index
      %c6_79 = arith.constant 6 : index
      %124 = memref.load %arg3[%123, %c6_79] : memref<2x8xi32, #tpu.memory_space<smem>>
      %125 = arith.index_cast %arg0 : i32 to index
      %c6_80 = arith.constant 6 : index
      %126 = memref.load %arg4[%125, %c6_80] : memref<2x8xi32, #tpu.memory_space<smem>>
      %127 = arith.index_cast %122 : i32 to index
      %c0_81 = arith.constant 0 : index
      %128 = vector.load %arg5[%127, %c0_81] : memref<32x16xf32, #tpu.memory_space<vmem>>, vector<1x16xf32>
      %c6_82 = arith.constant 6 : index
      %c0_83 = arith.constant 0 : index
      %129 = vector.load %arg13[%c6_82, %c0_83] : memref<8x16xf32, #tpu.memory_space<vmem>>, vector<1x16xf32>
      tpu.vector_store %arg13[%c6_82, %c0_83], %128 {strides = array<i32>} : memref<8x16xf32, #tpu.memory_space<vmem>>, vector<1x16xf32>,
      %130 = arith.index_cast %124 : i32 to index
      %c0_84 = arith.constant 0 : index
      %131 = vector.load %arg5[%130, %c0_84] : memref<32x16xf32, #tpu.memory_space<vmem>>, vector<1x16xf32>
      %132 = arith.index_cast %126 : i32 to index
      %c0_85 = arith.constant 0 : index
      %133 = vector.load %arg5[%132, %c0_85] : memref<32x16xf32, #tpu.memory_space<vmem>>, vector<1x16xf32>
      %134 = arith.addf %131, %133 : vector<1x16xf32>
      %cst_86 = arith.constant 5.000000e-01 : f32
      %135 = vector.broadcast %cst_86 : f32 to vector<1x16xf32>
      %136 = arith.mulf %135, %134 : vector<1x16xf32>
      %c6_87 = arith.constant 6 : index
      %c0_88 = arith.constant 0 : index
      %137 = vector.load %arg14[%c6_87, %c0_88] : memref<8x16xf32, #tpu.memory_space<vmem>>, vector<1x16xf32>
      tpu.vector_store %arg14[%c6_87, %c0_88], %136 {strides = array<i32>} : memref<8x16xf32, #tpu.memory_space<vmem>>, vector<1x16xf32>,
      %138 = arith.index_cast %arg0 : i32 to index
      %c7 = arith.constant 7 : index
      %139 = memref.load %arg2[%138, %c7] : memref<2x8xi32, #tpu.memory_space<smem>>
      %140 = arith.index_cast %arg0 : i32 to index
      %c7_89 = arith.constant 7 : index
      %141 = memref.load %arg3[%140, %c7_89] : memref<2x8xi32, #tpu.memory_space<smem>>
      %142 = arith.index_cast %arg0 : i32 to index
      %c7_90 = arith.constant 7 : index
      %143 = memref.load %arg4[%142, %c7_90] : memref<2x8xi32, #tpu.memory_space<smem>>
      %144 = arith.index_cast %139 : i32 to index
      %c0_91 = arith.constant 0 : index
      %145 = vector.load %arg5[%144, %c0_91] : memref<32x16xf32, #tpu.memory_space<vmem>>, vector<1x16xf32>
      %c7_92 = arith.constant 7 : index
      %c0_93 = arith.constant 0 : index
      %146 = vector.load %arg13[%c7_92, %c0_93] : memref<8x16xf32, #tpu.memory_space<vmem>>, vector<1x16xf32>
      tpu.vector_store %arg13[%c7_92, %c0_93], %145 {strides = array<i32>} : memref<8x16xf32, #tpu.memory_space<vmem>>, vector<1x16xf32>,
      %147 = arith.index_cast %141 : i32 to index
      %c0_94 = arith.constant 0 : index
      %148 = vector.load %arg5[%147, %c0_94] : memref<32x16xf32, #tpu.memory_space<vmem>>, vector<1x16xf32>
      %149 = arith.index_cast %143 : i32 to index
      %c0_95 = arith.constant 0 : index
      %150 = vector.load %arg5[%149, %c0_95] : memref<32x16xf32, #tpu.memory_space<vmem>>, vector<1x16xf32>
      %151 = arith.addf %148, %150 : vector<1x16xf32>
      %cst_96 = arith.constant 5.000000e-01 : f32
      %152 = vector.broadcast %cst_96 : f32 to vector<1x16xf32>
      %153 = arith.mulf %152, %151 : vector<1x16xf32>
      %c7_97 = arith.constant 7 : index
      %c0_98 = arith.constant 0 : index
      %154 = vector.load %arg14[%c7_97, %c0_98] : memref<8x16xf32, #tpu.memory_space<vmem>>, vector<1x16xf32>
      tpu.vector_store %arg14[%c7_97, %c0_98], %153 {strides = array<i32>} : memref<8x16xf32, #tpu.memory_space<vmem>>, vector<1x16xf32>,
      %c0_99 = arith.constant 0 : index
      %c0_100 = arith.constant 0 : index
      %155 = vector.load %arg13[%c0_99, %c0_100] : memref<8x16xf32, #tpu.memory_space<vmem>>, vector<8x16xf32>
      %c0_101 = arith.constant 0 : index
      %c0_102 = arith.constant 0 : index
      %156 = vector.load %arg14[%c0_101, %c0_102] : memref<8x16xf32, #tpu.memory_space<vmem>>, vector<8x16xf32>
      %c0_103 = arith.constant 0 : index
      %c0_104 = arith.constant 0 : index
      %157 = vector.load %arg7[%c0_103, %c0_104] : memref<1x16xf32, #tpu.memory_space<vmem>>, vector<1x16xf32>
      %158 = vector.broadcast %157 : vector<1x16xf32> to vector<8x16xf32>
      %159 = arith.mulf %155, %158 : vector<8x16xf32>
      %cst_105 = arith.constant dense<0.000000e+00> : vector<8xf32>
      %160 = vector.multi_reduction <add>, %159, %cst_105 [1] : vector<8x16xf32> to vector<8xf32>
      %161 = vector.shape_cast %160 : vector<8xf32> to vector<8x1xf32>
      %162 = arith.negf %161 : vector<8x1xf32>
      %163 = math.exp %162 : vector<8x1xf32>
      %cst_106 = arith.constant 1.000000e+00 : f32
      %164 = vector.broadcast %cst_106 : f32 to vector<8x1xf32>
      %165 = arith.addf %164, %163 : vector<8x1xf32>
      %166 = arith.divf %164, %165 : vector<8x1xf32>
      %167 = arith.subf %156, %155 : vector<8x16xf32>
      %168 = vector.broadcast %166 : vector<8x1xf32> to vector<8x16xf32>
      %169 = arith.mulf %168, %167 : vector<8x16xf32>
      %170 = arith.addf %155, %169 : vector<8x16xf32>
      %c0_107 = arith.constant 0 : index
      %c0_108 = arith.constant 0 : index
      %171 = vector.load %arg8[%c0_107, %c0_108] : memref<16x128xf32, #tpu.memory_space<vmem>>, vector<16x128xf32>
      %cst_109 = arith.constant dense<0.000000e+00> : vector<8x128xf32>
      %172 = tpu.matmul %170, %171, %cst_109 {dimension_numbers = #tpu.dot_dimension_numbers<[1], [0], [0], [1], [0, 0, 1, 1], [], []>} : vector<8x16xf32>, vector<16x128xf32>, vector<8x128xf32> -> vector<8x128xf32>
      %173 = arith.index_cast %arg0 : i32 to index
      %c0_110 = arith.constant 0 : index
      %174 = memref.load %arg2[%173, %c0_110] : memref<2x8xi32, #tpu.memory_space<smem>>
      %175 = vector.extract_strided_slice %172 {offsets = [0, 0], sizes = [1, 128], strides = [1, 1]} : vector<8x128xf32> to vector<1x128xf32>
      %176 = arith.index_cast %174 : i32 to index
      %c0_111 = arith.constant 0 : index
      %177 = vector.load %arg11[%176, %c0_111] : memref<32x128xf32, #tpu.memory_space<vmem>>, vector<1x128xf32>
      tpu.vector_store %arg11[%176, %c0_111], %175 {strides = array<i32>} : memref<32x128xf32, #tpu.memory_space<vmem>>, vector<1x128xf32>,
      %178 = arith.index_cast %arg0 : i32 to index
      %c1_112 = arith.constant 1 : index
      %179 = memref.load %arg2[%178, %c1_112] : memref<2x8xi32, #tpu.memory_space<smem>>
      %180 = vector.extract_strided_slice %172 {offsets = [1, 0], sizes = [1, 128], strides = [1, 1]} : vector<8x128xf32> to vector<1x128xf32>
      %181 = arith.index_cast %179 : i32 to index
      %c0_113 = arith.constant 0 : index
      %182 = vector.load %arg11[%181, %c0_113] : memref<32x128xf32, #tpu.memory_space<vmem>>, vector<1x128xf32>
      tpu.vector_store %arg11[%181, %c0_113], %180 {strides = array<i32>} : memref<32x128xf32, #tpu.memory_space<vmem>>, vector<1x128xf32>,
      %183 = arith.index_cast %arg0 : i32 to index
      %c2_114 = arith.constant 2 : index
      %184 = memref.load %arg2[%183, %c2_114] : memref<2x8xi32, #tpu.memory_space<smem>>
      %185 = vector.extract_strided_slice %172 {offsets = [2, 0], sizes = [1, 128], strides = [1, 1]} : vector<8x128xf32> to vector<1x128xf32>
      %186 = arith.index_cast %184 : i32 to index
      %c0_115 = arith.constant 0 : index
      %187 = vector.load %arg11[%186, %c0_115] : memref<32x128xf32, #tpu.memory_space<vmem>>, vector<1x128xf32>
      tpu.vector_store %arg11[%186, %c0_115], %185 {strides = array<i32>} : memref<32x128xf32, #tpu.memory_space<vmem>>, vector<1x128xf32>,
      %188 = arith.index_cast %arg0 : i32 to index
      %c3_116 = arith.constant 3 : index
      %189 = memref.load %arg2[%188, %c3_116] : memref<2x8xi32, #tpu.memory_space<smem>>
      %190 = vector.extract_strided_slice %172 {offsets = [3, 0], sizes = [1, 128], strides = [1, 1]} : vector<8x128xf32> to vector<1x128xf32>
      %191 = arith.index_cast %189 : i32 to index
      %c0_117 = arith.constant 0 : index
      %192 = vector.load %arg11[%191, %c0_117] : memref<32x128xf32, #tpu.memory_space<vmem>>, vector<1x128xf32>
      tpu.vector_store %arg11[%191, %c0_117], %190 {strides = array<i32>} : memref<32x128xf32, #tpu.memory_space<vmem>>, vector<1x128xf32>,
      %193 = arith.index_cast %arg0 : i32 to index
      %c4_118 = arith.constant 4 : index
      %194 = memref.load %arg2[%193, %c4_118] : memref<2x8xi32, #tpu.memory_space<smem>>
      %195 = vector.extract_strided_slice %172 {offsets = [4, 0], sizes = [1, 128], strides = [1, 1]} : vector<8x128xf32> to vector<1x128xf32>
      %196 = arith.index_cast %194 : i32 to index
      %c0_119 = arith.constant 0 : index
      %197 = vector.load %arg11[%196, %c0_119] : memref<32x128xf32, #tpu.memory_space<vmem>>, vector<1x128xf32>
      tpu.vector_store %arg11[%196, %c0_119], %195 {strides = array<i32>} : memref<32x128xf32, #tpu.memory_space<vmem>>, vector<1x128xf32>,
      %198 = arith.index_cast %arg0 : i32 to index
      %c5_120 = arith.constant 5 : index
      %199 = memref.load %arg2[%198, %c5_120] : memref<2x8xi32, #tpu.memory_space<smem>>
      %200 = vector.extract_strided_slice %172 {offsets = [5, 0], sizes = [1, 128], strides = [1, 1]} : vector<8x128xf32> to vector<1x128xf32>
      %201 = arith.index_cast %199 : i32 to index
      %c0_121 = arith.constant 0 : index
      %202 = vector.load %arg11[%201, %c0_121] : memref<32x128xf32, #tpu.memory_space<vmem>>, vector<1x128xf32>
      tpu.vector_store %arg11[%201, %c0_121], %200 {strides = array<i32>} : memref<32x128xf32, #tpu.memory_space<vmem>>, vector<1x128xf32>,
      %203 = arith.index_cast %arg0 : i32 to index
      %c6_122 = arith.constant 6 : index
      %204 = memref.load %arg2[%203, %c6_122] : memref<2x8xi32, #tpu.memory_space<smem>>
      %205 = vector.extract_strided_slice %172 {offsets = [6, 0], sizes = [1, 128], strides = [1, 1]} : vector<8x128xf32> to vector<1x128xf32>
      %206 = arith.index_cast %204 : i32 to index
      %c0_123 = arith.constant 0 : index
      %207 = vector.load %arg11[%206, %c0_123] : memref<32x128xf32, #tpu.memory_space<vmem>>, vector<1x128xf32>
      tpu.vector_store %arg11[%206, %c0_123], %205 {strides = array<i32>} : memref<32x128xf32, #tpu.memory_space<vmem>>, vector<1x128xf32>,
      %208 = arith.index_cast %arg0 : i32 to index
      %c7_124 = arith.constant 7 : index
      %209 = memref.load %arg2[%208, %c7_124] : memref<2x8xi32, #tpu.memory_space<smem>>
      %210 = vector.extract_strided_slice %172 {offsets = [7, 0], sizes = [1, 128], strides = [1, 1]} : vector<8x128xf32> to vector<1x128xf32>
      %211 = arith.index_cast %209 : i32 to index
      %c0_125 = arith.constant 0 : index
      %212 = vector.load %arg11[%211, %c0_125] : memref<32x128xf32, #tpu.memory_space<vmem>>, vector<1x128xf32>
      tpu.vector_store %arg11[%211, %c0_125], %210 {strides = array<i32>} : memref<32x128xf32, #tpu.memory_space<vmem>>, vector<1x128xf32>,
      %c0_126 = arith.constant 0 : index
      %c0_127 = arith.constant 0 : index
      %213 = vector.load %arg11[%c0_126, %c0_127] : memref<32x128xf32, #tpu.memory_space<vmem>>, vector<32x128xf32>
      %214 = arith.truncf %213 : vector<32x128xf32> to vector<32x128xbf16>
      %c0_128 = arith.constant 0 : index
      %c0_129 = arith.constant 0 : index
      %215 = vector.load %arg12[%c0_128, %c0_129] : memref<32x128xbf16, #tpu.memory_space<vmem>>, vector<32x128xbf16>
      tpu.vector_store %arg12[%c0_128, %c0_129], %214 {strides = array<i32>} : memref<32x128xbf16, #tpu.memory_space<vmem>>, vector<32x128xbf16>,
    } else {
    }
    %c0 = arith.constant 0 : index
    %c0_1 = arith.constant 0 : index
    %c0_2 = arith.constant 0 : index
    %3 = vector.load %arg6[%c0, %c0_1, %c0_2] : memref<1x16x32xbf16, #tpu.memory_space<vmem>>, vector<1x16x32xbf16>
    %4 = vector.shape_cast %3 : vector<1x16x32xbf16> to vector<16x32xbf16>
    %c0_3 = arith.constant 0 : index
    %c0_4 = arith.constant 0 : index
    %5 = vector.load %arg12[%c0_3, %c0_4] : memref<32x128xbf16, #tpu.memory_space<vmem>>, vector<32x128xbf16>
    %cst = arith.constant dense<0.000000e+00> : vector<16x128xf32>
    %6 = tpu.matmul %4, %5, %cst {dimension_numbers = #tpu.dot_dimension_numbers<[1], [0], [0], [1], [0, 0, 1, 1], [], []>} : vector<16x32xbf16>, vector<32x128xbf16>, vector<16x128xf32> -> vector<16x128xf32>
    %c0_5 = arith.constant 0 : index
    %c0_6 = arith.constant 0 : index
    %7 = vector.load %arg9[%c0_5, %c0_6] : memref<1x128xf32, #tpu.memory_space<vmem>>, vector<1x128xf32>
    %8 = vector.broadcast %7 : vector<1x128xf32> to vector<16x128xf32>
    %9 = arith.addf %6, %8 : vector<16x128xf32>
    %cst_7 = arith.constant 0.000000e+00 : f32
    %10 = vector.broadcast %cst_7 : f32 to vector<16x128xf32>
    %11 = arith.maximumf %9, %10 : vector<16x128xf32>
    %c0_8 = arith.constant 0 : index
    %c0_9 = arith.constant 0 : index
    %c0_10 = arith.constant 0 : index
    %12 = vector.load %arg10[%c0_8, %c0_9, %c0_10] : memref<1x16x128xf32, #tpu.memory_space<vmem>>, vector<1x16x128xf32>
    %13 = vector.shape_cast %12 : vector<1x16x128xf32> to vector<16x128xf32>
    %14 = vector.shape_cast %11 : vector<16x128xf32> to vector<1x16x128xf32>
    tpu.vector_store %arg10[%c0_8, %c0_9, %c0_10], %14 {strides = array<i32>} : memref<1x16x128xf32, #tpu.memory_space<vmem>>, vector<1x16x128xf32>,
    return
  }
  func.func @transform_0(%arg0: i32, %arg1: i32, %arg2: memref<2x8xi32, #tpu.memory_space<smem>>, %arg3: memref<2x8xi32, #tpu.memory_space<smem>>, %arg4: memref<2x8xi32, #tpu.memory_space<smem>>) -> (i32, i32) {
    %c0_i32 = arith.constant 0 : i32
    %c0_i32_0 = arith.constant 0 : i32
    %c0_i32_1 = arith.constant 0 : i32
    return %c0_i32, %c0_i32_0 : i32, i32
  }
  func.func @transform_1(%arg0: i32, %arg1: i32, %arg2: memref<2x8xi32, #tpu.memory_space<smem>>, %arg3: memref<2x8xi32, #tpu.memory_space<smem>>, %arg4: memref<2x8xi32, #tpu.memory_space<smem>>) -> (i32, i32, i32) {
    %c0_i32 = arith.constant 0 : i32
    %c0_i32_0 = arith.constant 0 : i32
    return %arg0, %arg1, %c0_i32 : i32, i32, i32
  }
  func.func @transform_2(%arg0: i32, %arg1: i32, %arg2: memref<2x8xi32, #tpu.memory_space<smem>>, %arg3: memref<2x8xi32, #tpu.memory_space<smem>>, %arg4: memref<2x8xi32, #tpu.memory_space<smem>>) -> (i32, i32) {
    %c0_i32 = arith.constant 0 : i32
    %c0_i32_0 = arith.constant 0 : i32
    %c0_i32_1 = arith.constant 0 : i32
    return %c0_i32, %c0_i32_0 : i32, i32
  }
  func.func @transform_3(%arg0: i32, %arg1: i32, %arg2: memref<2x8xi32, #tpu.memory_space<smem>>, %arg3: memref<2x8xi32, #tpu.memory_space<smem>>, %arg4: memref<2x8xi32, #tpu.memory_space<smem>>) -> (i32, i32) {
    %c0_i32 = arith.constant 0 : i32
    %c0_i32_0 = arith.constant 0 : i32
    %c0_i32_1 = arith.constant 0 : i32
    return %c0_i32, %c0_i32_0 : i32, i32
  }
  func.func @transform_4(%arg0: i32, %arg1: i32, %arg2: memref<2x8xi32, #tpu.memory_space<smem>>, %arg3: memref<2x8xi32, #tpu.memory_space<smem>>, %arg4: memref<2x8xi32, #tpu.memory_space<smem>>) -> (i32, i32) {
    %c0_i32 = arith.constant 0 : i32
    %c0_i32_0 = arith.constant 0 : i32
    %c0_i32_1 = arith.constant 0 : i32
    return %c0_i32, %c0_i32_0 : i32, i32
  }
  func.func @transform_5(%arg0: i32, %arg1: i32, %arg2: memref<2x8xi32, #tpu.memory_space<smem>>, %arg3: memref<2x8xi32, #tpu.memory_space<smem>>, %arg4: memref<2x8xi32, #tpu.memory_space<smem>>) -> (i32, i32, i32) {
    %c0_i32 = arith.constant 0 : i32
    %c0_i32_0 = arith.constant 0 : i32
    return %arg0, %arg1, %c0_i32 : i32, i32, i32
  }
}

</mosaic_0001>

<llo_original>
// kernel: smote_hg_forward.1
$region0: #{smote_hg_forward.1}
  #allocation0 [shape = 'u32[]', space=smem, size = 0x4, offset = 0x4, fixed_abs, tag = 'smem constant byte address 0x4 - core index']
  #allocation1 [shape = 'u32[72,128]{1,0:T(1,128)}', space=vmem, size = 0x9000, scoped, tag = 'internal scratch']
  #allocation2 [shape = 'f32[32,128]{1,0:T(8,128)}', space=vmem, size = 0x4000, scoped, tag = 'scratch operand']
  #allocation3 [shape = 'bf16[32,128]{1,0:T(8,128)(2,1)}', space=vmem, size = 0x2000, scoped, tag = 'scratch operand']
  #allocation4 [shape = 'f32[8,16]{1,0:T(8,128)}', space=vmem, size = 0x1000, scoped, tag = 'scratch operand']
  #allocation5 [shape = 'f32[8,16]{1,0:T(8,128)}', space=vmem, size = 0x1000, scoped, tag = 'scratch operand']
  #allocation6 [shape = 's32[1]{0}', space=sflag, size = 0x4, scoped, tag = 'scoped memory for smote_hg_forward.1']
  #allocation7 [shape = 'u8[1024]{0}', space=smem, size = 0x400, scoped, tag = 'prefetched SMEM operand 0']
  #allocation8 [shape = 'u8[1024]{0}', space=smem, size = 0x400, scoped, tag = 'prefetched SMEM operand 1']
  #allocation9 [shape = 'u8[1024]{0}', space=smem, size = 0x400, scoped, tag = 'prefetched SMEM operand 2']
  %s0 = inlined_call_operand.vmem [shape: s32[2,8], index: 0, kind: input, shape index: {}]
  %s1 = inlined_call_operand.vmem [shape: s32[2,8], index: 1, kind: input, shape index: {}]
  %s2 = inlined_call_operand.vmem [shape: s32[2,8], index: 2, kind: input, shape index: {}]
  %s3 = inlined_call_operand.vmem [shape: f32[32,16], index: 3, kind: input, shape index: {}]
  %s4 = inlined_call_operand.vmem [shape: bf16[2,32,32], index: 4, kind: input, shape index: {}]
  %s5 = inlined_call_operand.vmem [shape: f32[1,16], index: 5, kind: input, shape index: {}]
  %s6 = inlined_call_operand.vmem [shape: f32[16,128], index: 6, kind: input, shape index: {}]
  %s7 = inlined_call_operand.vmem [shape: f32[1,128], index: 7, kind: input, shape index: {}]
  %s8 = inlined_call_operand.hbm [shape: f32[2,32,128], index: 8, kind: output, shape index: {}]
  %s9 = sld [smem:[#allocation0]]
  $region57: #{smote_hg_forward.1} parent=0
    _
  %s11 = ssub.s32 1, %s9
  %s12 = scalar_select 0, %s11, %s9
  %s14 = sshll.u32 %s0, 4
  %s15 = int_to_ptr.vmem [resolvable:$true] %s14
  %17 = dma.vmem_to_smem %s15, 32, [#allocation7], [#allocation6]
  %s19 = sshll.u32 %s1, 4
  %s20 = int_to_ptr.vmem [resolvable:$true] %s19
  %22 = dma.vmem_to_smem %s20, 32, [#allocation8], [#allocation6]
  %s24 = sshll.u32 %s2, 4
  %s25 = int_to_ptr.vmem [resolvable:$true] %s24
  %27 = dma.vmem_to_smem %s25, 32, [#allocation9], [#allocation6]
  %29 = dma.done [#allocation6], 96
  %30 = sfence
  $region1: #{smote_hg_forward.1} parent=0
    #allocation10 [shape = 'u8[16384]{0}', space=vmem, size = 0x4000, scoped, tag = 'output window, operand 0']
    #allocation11 [shape = 's32[2]{0}', space=sflag, size = 0x8, scoped, tag = 'scoped memory for smote_hg_forward.1']
    %31 = vsyncpa [#allocation11], 0
    %s32 = scalar_lea.sflag [#allocation11], 1
    %33 = vsyncpa %s32, 0
    loop: start=0, step=1, limit=6
    $region2: #{smote_hg_forward.1} parent=1 // loop_pre_header
      _
    $region3: #{smote_hg_forward.1} parent=1 // loop_header
      %s35 = sphi 0, %s39
      %p36 = scmp.ge.s32.totalorder %s35, 6
      %s42 = sphi 0, %s54
      %s43 = sphi 0, %s50
      %s44 = sphi 0, %s42
      %s45 = sphi 0, %s43
      %s46 = sphi 0, %s44
      %s47 = sphi 0, %s45
      %s55 = sphi 0, %s55
      %s57 = sphi 0, %s55
      %s58 = sphi 0, %s57
      %s72 = sphi 0, %s58
      %s80 = sphi 0, %s82
      %s83 = sphi 0, %s80
      %s84 = sphi 0, %s83
      %s100 = sphi 0, %s84
      %s104 = sphi 0, %s104
      %s106 = sphi 0, %s104
      %s107 = sphi 0, %s106
      %s121 = sphi 0, %s107
      %s125 = sphi 0, %s125
      %s127 = sphi 0, %s125
      %s128 = sphi 0, %s127
      %s142 = sphi 0, %s128
      %s146 = sphi 0, %s146
      %s148 = sphi 0, %s146
      %s149 = sphi 0, %s148
      %s163 = sphi 0, %s149
      %s171 = sphi 0, %s173
      %s174 = sphi 0, %s171
      %s175 = sphi 0, %s174
      %s191 = sphi 0, %s175
    $region4: #{smote_hg_forward.1} parent=1 // loop_header_branch
      %38 = sbr.rel (%p36) target = $region8
    $region5: #{smote_hg_forward.1} parent=1 // loop_body
      %s40 = ssub.s32 %s35, 1
      %s41 = ssub.s32 %s35, 2
      %s48 = sadd.s32 1, %s43
      %p49 = scmp.ge.s32.totalorder %s48, 2
      %s50 = scalar_select %p49, 0, %s48
      %s51 = sadd.s32 1, %s42
      %s52 = scalar_select %p49, %s51, %s42
      %p53 = scmp.ge.s32.totalorder %s52, 2
      %s54 = scalar_select %p53, 0, %s52
      %s56 = sadd.s32 %s55, 1
      %p59 = scmp.eq.s32.totalorder %s35, 3
      %p60 = scmp.ne.s32.totalorder %s55, %s57
      %p61 = scmp.eq.s32.totalorder %s35, 0
      %p62 = por %p60, %p61
      %p63 = scmp.ne.s32.totalorder %s55, %s57
      %p64 = scmp.eq.s32.totalorder %s40, 3
      %p65 = por %p63, %p64
      %p66 = scmp.ne.s32.totalorder %s57, %s58
      %p67 = scmp.eq.s32.totalorder %s40, 0
      %p68 = por %p66, %p67
      %p69 = scmp.ne.s32.totalorder %s57, %s58
      %p70 = scmp.eq.s32.totalorder %s41, 3
      %p71 = por %p69, %p70
      %p73 = scmp.ne.s32.totalorder %s58, %s72
      %p74 = scmp.eq.s32.totalorder %s41, 0
      %p75 = por %p73, %p74
      %s76 = ssub.s32 %s42, %s54
      %s77 = ssub.s32 %s43, %s50
      %s78 = sor.u32 %s76, %s77
      %p79 = scmp.eq.s32.totalorder %s78, 0
      %s81 = sadd.s32 %s80, 1
      %s82 = scalar_select %p79, %s80, %s81
      %p85 = pneg %p79
      %p86 = scmp.eq.s32.totalorder %s35, 3
      %p87 = por %p85, %p86
      %p88 = scmp.ne.s32.totalorder %s80, %s83
      %p89 = scmp.eq.s32.totalorder %s35, 0
      %p90 = por %p88, %p89
      %p91 = scmp.ne.s32.totalorder %s80, %s83
      %p92 = scmp.eq.s32.totalorder %s40, 3
      %p93 = por %p91, %p92
      %p94 = scmp.ne.s32.totalorder %s83, %s84
      %p95 = scmp.eq.s32.totalorder %s40, 0
      %p96 = por %p94, %p95
      %p97 = scmp.ne.s32.totalorder %s83, %s84
      %p98 = scmp.eq.s32.totalorder %s41, 3
      %p99 = por %p97, %p98
      %p101 = scmp.ne.s32.totalorder %s84, %s100
      %p102 = scmp.eq.s32.totalorder %s41, 0
      %p103 = por %p101, %p102
      %s105 = sadd.s32 %s104, 1
      %p108 = scmp.eq.s32.totalorder %s35, 3
      %p109 = scmp.ne.s32.totalorder %s104, %s106
      %p110 = scmp.eq.s32.totalorder %s35, 0
      %p111 = por %p109, %p110
      %p112 = scmp.ne.s32.totalorder %s104, %s106
      %p113 = scmp.eq.s32.totalorder %s40, 3
      %p114 = por %p112, %p113
      %p115 = scmp.ne.s32.totalorder %s106, %s107
      %p116 = scmp.eq.s32.totalorder %s40, 0
      %p117 = por %p115, %p116
      %p118 = scmp.ne.s32.totalorder %s106, %s107
      %p119 = scmp.eq.s32.totalorder %s41, 3
      %p120 = por %p118, %p119
      %p122 = scmp.ne.s32.totalorder %s107, %s121
      %p123 = scmp.eq.s32.totalorder %s41, 0
      %p124 = por %p122, %p123
      %s126 = sadd.s32 %s125, 1
      %p129 = scmp.eq.s32.totalorder %s35, 3
      %p130 = scmp.ne.s32.totalorder %s125, %s127
      %p131 = scmp.eq.s32.totalorder %s35, 0
      %p132 = por %p130, %p131
      %p133 = scmp.ne.s32.totalorder %s125, %s127
      %p134 = scmp.eq.s32.totalorder %s40, 3
      %p135 = por %p133, %p134
      %p136 = scmp.ne.s32.totalorder %s127, %s128
      %p137 = scmp.eq.s32.totalorder %s40, 0
      %p138 = por %p136, %p137
      %p139 = scmp.ne.s32.totalorder %s127, %s128
      %p140 = scmp.eq.s32.totalorder %s41, 3
      %p141 = por %p139, %p140
      %p143 = scmp.ne.s32.totalorder %s128, %s142
      %p144 = scmp.eq.s32.totalorder %s41, 0
      %p145 = por %p143, %p144
      %s147 = sadd.s32 %s146, 1
      %p150 = scmp.eq.s32.totalorder %s35, 3
      %p151 = scmp.ne.s32.totalorder %s146, %s148
      %p152 = scmp.eq.s32.totalorder %s35, 0
      %p153 = por %p151, %p152
      %p154 = scmp.ne.s32.totalorder %s146, %s148
      %p155 = scmp.eq.s32.totalorder %s40, 3
      %p156 = por %p154, %p155
      %p157 = scmp.ne.s32.totalorder %s148, %s149
      %p158 = scmp.eq.s32.totalorder %s40, 0
      %p159 = por %p157, %p158
      %p160 = scmp.ne.s32.totalorder %s148, %s149
      %p161 = scmp.eq.s32.totalorder %s41, 3
      %p162 = por %p160, %p161
      %p164 = scmp.ne.s32.totalorder %s149, %s163
      %p165 = scmp.eq.s32.totalorder %s41, 0
      %p166 = por %p164, %p165
      %s167 = ssub.s32 %s42, %s54
      %s168 = ssub.s32 %s43, %s50
      %s169 = sor.u32 %s167, %s168
      %p170 = scmp.eq.s32.totalorder %s169, 0
      %s172 = sadd.s32 %s171, 1
      %s173 = scalar_select %p170, %s171, %s172
      %p176 = pneg %p170
      %p177 = scmp.eq.s32.totalorder %s35, 3
      %p178 = por %p176, %p177
      %p179 = scmp.ne.s32.totalorder %s171, %s174
      %p180 = scmp.eq.s32.totalorder %s35, 0
      %p181 = por %p179, %p180
      %p182 = scmp.ne.s32.totalorder %s171, %s174
      %p183 = scmp.eq.s32.totalorder %s40, 3
      %p184 = por %p182, %p183
      %p185 = scmp.ne.s32.totalorder %s174, %s175
      %p186 = scmp.eq.s32.totalorder %s40, 0
      %p187 = por %p185, %p186
      %p188 = scmp.ne.s32.totalorder %s174, %s175
      %p189 = scmp.eq.s32.totalorder %s41, 3
      %p190 = por %p188, %p189
      %p192 = scmp.ne.s32.totalorder %s175, %s191
      %p193 = scmp.eq.s32.totalorder %s41, 0
      %p194 = por %p192, %p193
      %p195 = scmp.le.s32.totalorder 1, %s35
      %p196 = scmp.lt.s32.totalorder %s35, 5
      %p197 = pnand %p195, %p196
      %p198 = pneg %p197
      // Predicated region
      $region9: #{smote_hg_forward.1} parent=5 // pred_check
        _
      $region10: #{smote_hg_forward.1} parent=5 // pred_check_branch
        %200 = sbr.rel (%p197) target = $region12
      $region11: #{smote_hg_forward.1} parent=5 // pred_region
        %s201 = ssub.s32 %s35, 1
        // Predicated region
        $region13: #{smote_hg_forward.1} parent=11 // pred_check
          %p202 = pneg %p68
        $region14: #{smote_hg_forward.1} parent=11 // pred_check_branch
          %204 = sbr.rel (%p202) target = $region16
        $region15: #{smote_hg_forward.1} parent=11 // pred_region
          _
        $region16: #{smote_hg_forward.1} parent=11 // pred_fallthru
          _
        // Predicated region
        $region17: #{smote_hg_forward.1} parent=11 // pred_check
          %p205 = pneg %p117
        $region18: #{smote_hg_forward.1} parent=11 // pred_check_branch
          %207 = sbr.rel (%p205) target = $region20
        $region19: #{smote_hg_forward.1} parent=11 // pred_region
          _
        $region20: #{smote_hg_forward.1} parent=11 // pred_fallthru
          _
        // Predicated region
        $region21: #{smote_hg_forward.1} parent=11 // pred_check
          %p208 = pneg %p138
        $region22: #{smote_hg_forward.1} parent=11 // pred_check_branch
          %210 = sbr.rel (%p208) target = $region24
        $region23: #{smote_hg_forward.1} parent=11 // pred_region
          _
        $region24: #{smote_hg_forward.1} parent=11 // pred_fallthru
          _
        // Predicated region
        $region25: #{smote_hg_forward.1} parent=11 // pred_check
          %p211 = pneg %p159
        $region26: #{smote_hg_forward.1} parent=11 // pred_check_branch
          %213 = sbr.rel (%p211) target = $region28
        $region27: #{smote_hg_forward.1} parent=11 // pred_region
          _
        $region28: #{smote_hg_forward.1} parent=11 // pred_fallthru
          _
      $region12: #{smote_hg_forward.1} parent=5 // pred_fallthru
        _
      %p214 = scmp.lt.s32.totalorder %s35, 4
      // Predicated region
      $region29: #{smote_hg_forward.1} parent=5 // pred_check
        %p215 = pneg %p214
      $region30: #{smote_hg_forward.1} parent=5 // pred_check_branch
        %217 = sbr.rel (%p215) target = $region32
      $region31: #{smote_hg_forward.1} parent=5 // pred_region
        // Predicated region
        $region33: #{smote_hg_forward.1} parent=31 // pred_check
          %p218 = pneg %p90
        $region34: #{smote_hg_forward.1} parent=31 // pred_check_branch
          %220 = sbr.rel (%p218) target = $region36
        $region35: #{smote_hg_forward.1} parent=31 // pred_region
          %s221 = smul.u32 2, %s43
          %p222 = scmp.lt.s32.totalorder %s42, 1
          %s223 = scalar_select %p222, %s42, 1
          %p224 = scmp.lt.s32.totalorder %s221, 3
          %s225 = scalar_select %p224, %s221, 3
          %s226 = smul.addr %s223, 4
          %s227 = sadd.s32 %s225, %s226
          %s228 = smul.addr %s227, 4
          %s229 = scalar_lea.vmem %s4, %s228
          %s230 = smul.u32 2, %s43
        $region36: #{smote_hg_forward.1} parent=31 // pred_fallthru
          _
      $region32: #{smote_hg_forward.1} parent=5 // pred_fallthru
        _
      %p231 = scmp.le.s32.totalorder 1, %s35
      %p232 = scmp.lt.s32.totalorder %s35, 5
      %p233 = pnand %p231, %p232
      %p234 = pneg %p233
      // Predicated region
      $region37: #{smote_hg_forward.1} parent=5 // pred_check
        _
      $region38: #{smote_hg_forward.1} parent=5 // pred_check_branch
        %236 = sbr.rel (%p233) target = $region40
      $region39: #{smote_hg_forward.1} parent=5 // pred_region
        %s237 = ssub.s32 %s35, 1
        %p238 = pneg %p68
        %p239 = pneg %p65
        %s240 = smul.u32 2, %s45
        %p241 = scmp.lt.s32.totalorder %s44, 1
        %s242 = scalar_select %p241, %s44, 1
        %p243 = scmp.lt.s32.totalorder %s240, 3
        %s244 = scalar_select %p243, %s240, 3
        %s245 = smul.addr %s242, 4
        %s246 = sadd.s32 %s244, %s245
        %s247 = smul.addr %s246, 4
        %s248 = scalar_lea.vmem %s4, %s247
        %p249 = pneg %p96
        %p250 = pneg %p93
        %p251 = pneg %p117
        %p252 = pneg %p114
        %p253 = pneg %p138
        %p254 = pneg %p135
        %p255 = pneg %p159
        %p256 = pneg %p156
        %p257 = pneg %p187
        %p258 = pneg %p184
        %s259 = sand.u32 %s174, 1
        %s260 = scalar_lea.sflag [#allocation11], %s259
        %s261 = sand.u32 %s174, 1
        %s262 = smul.addr %s261, 16
        %s263 = scalar_lea.vmem [#allocation10], %s262
        %s264 = smul.u32 2, %s45
        %p265 = scmp.lt.s32.totalorder %s44, 1
        %s266 = scalar_select %p265, %s44, 1
        %p267 = scmp.lt.s32.totalorder %s264, 3
        %s268 = scalar_select %p267, %s264, 3
        %s269 = smul.addr %s266, 4
        %s270 = sadd.s32 %s268, %s269
        %s271 = smul.addr %s270, 4
        %s272 = scalar_lea.vmem %s4, %s271
        %s273 = smul.u32 2, %s45
        %s274 = smul.u32 2, %s45
        %p276 = scmp.eq.s32.totalorder %s45, 0
        // Predicated region
        $region41: #{smote_hg_forward.1} parent=39 // pred_check
          %p277 = pneg %p276
        $region42: #{smote_hg_forward.1} parent=39 // pred_check_branch
          %279 = sbr.rel (%p277) target = $region44
        $region43: #{smote_hg_forward.1} parent=39 // pred_region
          %v280 = vld [vmem:[%s3] sm:$0xff]
          %v281 = vld [vmem:[%s3 + $0x8] sm:$0xff]
          %v282 = vld [vmem:[%s3 + $0x10] sm:$0xff]
          %v283 = vld [vmem:[%s3 + $0x18] sm:$0xff]
          %v284 = vld [vmem:[%s6] sm:$0xff]
          %v285 = vld [vmem:[%s6 + $0x8] sm:$0xff]
          %vm286 = vcmask 130048
          %v288 = vsel %vm286, %v280, 0
          %v291 = vsel %vm286, %v281, 0
          %v294 = vsel %vm286, %v282, 0
          %v297 = vsel %vm286, %v283, 0
          %299 = vmatpush.msra.mxu0 0.0
          %300 = vmatpush.msra.mxu0 0.0
          %301 = vmatpush.msra.mxu0 0.0
          %302 = vmatpush.msra.mxu0 0.0
          %303 = vmatpush.msra.mxu0 0.0
          %304 = vmatpush.msra.mxu0 0.0
          %305 = vmatpush.msra.mxu0 0.0
          %306 = vmatpush.msra.mxu0 0.0
          %307 = vmatpush.msra.mxu0 0.0
          %308 = vmatpush.msra.mxu0 0.0
          %309 = vmatpush.msra.mxu0 0.0
          %310 = vmatpush.msra.mxu0 0.0
          %311 = vmatpush.msra.mxu0 0.0
          %312 = vmatpush.msra.mxu0 0.0
          %313 = vmatpush.msra.mxu0 %v285
          %314 = vmatpush.msra.mxu0 %v284
          %315 = vmatmul.f32.gmra.mxu0 %v288
          %v316 = vpop.f32.mrf.mxu0
          %v317 = vadd.f32 0.0, %v316
          %318 = vmatmul.f32.gmra.mxu0 %v291
          %v319 = vpop.f32.mrf.mxu0
          %v320 = vadd.f32 0.0, %v319
          %321 = vmatmul.f32.gmra.mxu0 %v294
          %v322 = vpop.f32.mrf.mxu0
          %v323 = vadd.f32 0.0, %v322
          %324 = vmatmul.f32.gmra.mxu0 %v297
          %v325 = vpop.f32.mrf.mxu0
          %v326 = vadd.f32 0.0, %v325
          %327 = vdwg.mxu0
          %328 = vst [vmem:[#allocation2] sm:$0xff] %v317
          %329 = vst [vmem:[#allocation2 + $0x8] sm:$0xff] %v320
          %330 = vst [vmem:[#allocation2 + $0x10] sm:$0xff] %v323
          %331 = vst [vmem:[#allocation2 + $0x18] sm:$0xff] %v326
          %s332 = smul.u32 %s44, 128
          %s333 = sld [smem:[#allocation7 + %s332]]
          %s334 = sld [smem:[#allocation8 + %s332]]
          %s335 = sld [smem:[#allocation9 + %s332]]
          %s336 = scalar_lea.vmem %s3, %s333
          %v337 = vld [vmem:[%s336] sm:$0x1]
          %vm338 = vcmask 122880
          %339 = vst.msk [vmem:[#allocation4] sm:$0x1] %vm338, %v337
          %s340 = scalar_lea.vmem %s3, %s334
          %v341 = vld [vmem:[%s340] sm:$0x1]
          %s342 = scalar_lea.vmem %s3, %s335
          %v343 = vld [vmem:[%s342] sm:$0x1]
          %v344 = vadd.f32 %v341, %v343
          %v345 = vmul.f32 %v344, 0.5
          %346 = vst.msk [vmem:[#allocation5] sm:$0x1] %vm338, %v345
          %s347 = sadd.s32 %s332, 1
          %s348 = sld [smem:[#allocation7 + %s347]]
          %s349 = sld [smem:[#allocation8 + %s347]]
          %s350 = sld [smem:[#allocation9 + %s347]]
          %s351 = scalar_lea.vmem %s3, %s348
          %v352 = vld [vmem:[%s351] sm:$0x1]
          %353 = vst.msk [vmem:[#allocation4 + $0x1] sm:$0x1] %vm338, %v352
          %s354 = scalar_lea.vmem %s3, %s349
          %v355 = vld [vmem:[%s354] sm:$0x1]
          %s356 = scalar_lea.vmem %s3, %s350
          %v357 = vld [vmem:[%s356] sm:$0x1]
          %v358 = vadd.f32 %v355, %v357
          %v359 = vmul.f32 %v358, 0.5
          %360 = vst.msk [vmem:[#allocation5 + $0x1] sm:$0x1] %vm338, %v359
          %s361 = sadd.s32 %s332, 2
          %s362 = sld [smem:[#allocation7 + %s361]]
          %s363 = sld [smem:[#allocation8 + %s361]]
          %s364 = sld [smem:[#allocation9 + %s361]]
          %s365 = scalar_lea.vmem %s3, %s362
          %v366 = vld [vmem:[%s365] sm:$0x1]
          %367 = vst.msk [vmem:[#allocation4 + $0x2] sm:$0x1] %vm338, %v366
          %s368 = scalar_lea.vmem %s3, %s363
          %v369 = vld [vmem:[%s368] sm:$0x1]
          %s370 = scalar_lea.vmem %s3, %s364
          %v371 = vld [vmem:[%s370] sm:$0x1]
          %v372 = vadd.f32 %v369, %v371
          %v373 = vmul.f32 %v372, 0.5
          %374 = vst.msk [vmem:[#allocation5 + $0x2] sm:$0x1] %vm338, %v373
          %s375 = sadd.s32 %s332, 3
          %s376 = sld [smem:[#allocation7 + %s375]]
          %s377 = sld [smem:[#allocation8 + %s375]]
          %s378 = sld [smem:[#allocation9 + %s375]]
          %s379 = scalar_lea.vmem %s3, %s376
          %v380 = vld [vmem:[%s379] sm:$0x1]
          %381 = vst.msk [vmem:[#allocation4 + $0x3] sm:$0x1] %vm338, %v380
          %s382 = scalar_lea.vmem %s3, %s377
          %v383 = vld [vmem:[%s382] sm:$0x1]
          %s384 = scalar_lea.vmem %s3, %s378
          %v385 = vld [vmem:[%s384] sm:$0x1]
          %v386 = vadd.f32 %v383, %v385
          %v387 = vmul.f32 %v386, 0.5
          %388 = vst.msk [vmem:[#allocation5 + $0x3] sm:$0x1] %vm338, %v387
          %s389 = sadd.s32 %s332, 4
          %s390 = sld [smem:[#allocation7 + %s389]]
          %s391 = sld [smem:[#allocation8 + %s389]]
          %s392 = sld [smem:[#allocation9 + %s389]]
          %s393 = scalar_lea.vmem %s3, %s390
          %v394 = vld [vmem:[%s393] sm:$0x1]
          %395 = vst.msk [vmem:[#allocation4 + $0x4] sm:$0x1] %vm338, %v394
          %s396 = scalar_lea.vmem %s3, %s391
          %v397 = vld [vmem:[%s396] sm:$0x1]
          %s398 = scalar_lea.vmem %s3, %s392
          %v399 = vld [vmem:[%s398] sm:$0x1]
          %v400 = vadd.f32 %v397, %v399
          %v401 = vmul.f32 %v400, 0.5
          %402 = vst.msk [vmem:[#allocation5 + $0x4] sm:$0x1] %vm338, %v401
          %s403 = sadd.s32 %s332, 5
          %s404 = sld [smem:[#allocation7 + %s403]]
          %s405 = sld [smem:[#allocation8 + %s403]]
          %s406 = sld [smem:[#allocation9 + %s403]]
          %s407 = scalar_lea.vmem %s3, %s404
          %v408 = vld [vmem:[%s407] sm:$0x1]
          %409 = vst.msk [vmem:[#allocation4 + $0x5] sm:$0x1] %vm338, %v408
          %s410 = scalar_lea.vmem %s3, %s405
          %v411 = vld [vmem:[%s410] sm:$0x1]
          %s412 = scalar_lea.vmem %s3, %s406
          %v413 = vld [vmem:[%s412] sm:$0x1]
          %v414 = vadd.f32 %v411, %v413
          %v415 = vmul.f32 %v414, 0.5
          %416 = vst.msk [vmem:[#allocation5 + $0x5] sm:$0x1] %vm338, %v415
          %s417 = sadd.s32 %s332, 6
          %s418 = sld [smem:[#allocation7 + %s417]]
          %s419 = sld [smem:[#allocation8 + %s417]]
          %s420 = sld [smem:[#allocation9 + %s417]]
          %s421 = scalar_lea.vmem %s3, %s418
          %v422 = vld [vmem:[%s421] sm:$0x1]
          %423 = vst.msk [vmem:[#allocation4 + $0x6] sm:$0x1] %vm338, %v422
          %s424 = scalar_lea.vmem %s3, %s419
          %v425 = vld [vmem:[%s424] sm:$0x1]
          %s426 = scalar_lea.vmem %s3, %s420
          %v427 = vld [vmem:[%s426] sm:$0x1]
          %v428 = vadd.f32 %v425, %v427
          %v429 = vmul.f32 %v428, 0.5
          %430 = vst.msk [vmem:[#allocation5 + $0x6] sm:$0x1] %vm338, %v429
          %s431 = sadd.s32 %s332, 7
          %s432 = sld [smem:[#allocation7 + %s431]]
          %s433 = sld [smem:[#allocation8 + %s431]]
          %s434 = sld [smem:[#allocation9 + %s431]]
          %s435 = scalar_lea.vmem %s3, %s432
          %v436 = vld [vmem:[%s435] sm:$0x1]
          %437 = vst.msk [vmem:[#allocation4 + $0x7] sm:$0x1] %vm338, %v436
          %s438 = scalar_lea.vmem %s3, %s433
          %v439 = vld [vmem:[%s438] sm:$0x1]
          %s440 = scalar_lea.vmem %s3, %s434
          %v441 = vld [vmem:[%s440] sm:$0x1]
          %v442 = vadd.f32 %v439, %v441
          %v443 = vmul.f32 %v442, 0.5
          %444 = vst.msk [vmem:[#allocation5 + $0x7] sm:$0x1] %vm338, %v443
          %v445 = vld [vmem:[#allocation4] sm:$0xff]
          %v446 = vld [vmem:[#allocation5] sm:$0xff]
          %v447 = vld [vmem:[%s5] sm:$0x1]
          %v449 = vperm.slane %v447, 0
          %v451 = vmul.f32 %v445, %v449
          %v452 = vsel %vm286, %v451, 0.0
          %453 = vadd.xlane.f32.xlu0 %v452
          %v454 = vpop.xlane.xlu0 %453
          %v455 = vxor.u32 %v454, 2147483648
          %v456 = vmul.f32 %v455, 1.442695
          %v457 = vpow.pop %v456
          %v458 = vadd.f32 %v457, 1.0
          %v459 = vrcp.pop %v458
          %v460 = vmul.f32 %v458, %v459
          %v461 = vsub.f32 1.0, %v460
          %v462 = vmul.f32 %v459, %v461
          %v463 = vadd.f32 %v459, %v462
          %vm464 = vweird.f32 %v458
          %vm465 = vweird.f32 %v459
          %vm466 = vmor %vm464, %vm465
          %v467 = vsel %vm466, %v459, %v463
          %v468 = vand.u32 2147483647, %v458
          %vm469 = vcmp.eq.f32.partialorder %v468, 8.507059e+37
          %v470 = vand.u32 %v458, 2147483648
          %v471 = vor.u32 1.1754944e-38, %v470
          %v472 = vsel %vm469, %v471, %v467
          %v473 = vmul.f32 1.0, %v472
          %v474 = vsub.f32 %v446, %v445
          %v475 = vmul.f32 %v473, %v474
          %v476 = vadd.f32 %v445, %v475
          %v477 = vld [vmem:[%s6] sm:$0xff]
          %v478 = vld [vmem:[%s6 + $0x8] sm:$0xff]
          %v480 = vsel %vm286, %v476, 0
          %482 = vmatpush.msra.mxu0 0.0
          %483 = vmatpush.msra.mxu0 0.0
          %484 = vmatpush.msra.mxu0 0.0
          %485 = vmatpush.msra.mxu0 0.0
          %486 = vmatpush.msra.mxu0 0.0
          %487 = vmatpush.msra.mxu0 0.0
          %488 = vmatpush.msra.mxu0 0.0
          %489 = vmatpush.msra.mxu0 0.0
          %490 = vmatpush.msra.mxu0 0.0
          %491 = vmatpush.msra.mxu0 0.0
          %492 = vmatpush.msra.mxu0 0.0
          %493 = vmatpush.msra.mxu0 0.0
          %494 = vmatpush.msra.mxu0 0.0
          %495 = vmatpush.msra.mxu0 0.0
          %496 = vmatpush.msra.mxu0 %v478
          %497 = vmatpush.msra.mxu0 %v477
          %498 = vmatmul.f32.gmra.mxu0 %v480
          %v499 = vpop.f32.mrf.mxu0
          %v500 = vadd.f32 0.0, %v499
          %501 = vdwg.mxu0
          %s502 = sld [smem:[#allocation7 + %s332]]
          %s503 = scalar_lea.vmem [#allocation2], %s502
          %504 = vst [vmem:[%s503] sm:$0x1] %v500
          %s505 = sld [smem:[#allocation7 + %s347]]
          %s506 = scalar_lea.vmem [#allocation2], %s505
          %507 = vst [vmem:[%s506 - $0x1] sm:$0x2] %v500
          %s508 = sld [smem:[#allocation7 + %s361]]
          %s509 = scalar_lea.vmem [#allocation2], %s508
          %510 = vst [vmem:[%s509 - $0x2] sm:$0x4] %v500
          %s511 = sld [smem:[#allocation7 + %s375]]
          %s512 = scalar_lea.vmem [#allocation2], %s511
          %513 = vst [vmem:[%s512 - $0x3] sm:$0x8] %v500
          %s514 = sld [smem:[#allocation7 + %s389]]
          %s515 = scalar_lea.vmem [#allocation2], %s514
          %516 = vst [vmem:[%s515 - $0x4] sm:$0x10] %v500
          %s517 = sld [smem:[#allocation7 + %s403]]
          %s518 = scalar_lea.vmem [#allocation2], %s517
          %519 = vst [vmem:[%s518 - $0x5] sm:$0x20] %v500
          %s520 = sld [smem:[#allocation7 + %s417]]
          %s521 = scalar_lea.vmem [#allocation2], %s520
          %522 = vst [vmem:[%s521 - $0x6] sm:$0x40] %v500
          %s523 = sld [smem:[#allocation7 + %s431]]
          %s524 = scalar_lea.vmem [#allocation2], %s523
          %525 = vst [vmem:[%s524 - $0x7] sm:$0x80] %v500
          %v526 = vld [vmem:[#allocation2] sm:$0xff]
          %v527 = vld [vmem:[#allocation2 + $0x8] sm:$0xff]
          %v528 = vld [vmem:[#allocation2 + $0x10] sm:$0xff]
          %v529 = vld [vmem:[#allocation2 + $0x18] sm:$0xff]
          %v530 = vpack.c.bf16 %v526, %v526
          %v531 = vpack.c.bf16 %v527, %v527
          %v532 = vpack.c.bf16 %v528, %v528
          %v533 = vpack.c.bf16 %v529, %v529
          %534 = vst [vmem:[#allocation3] sm:$0xf] %v530
          %535 = vst [vmem:[#allocation3 + $0x4] sm:$0xf] %v531
          %536 = vst [vmem:[#allocation3 + $0x8] sm:$0xf] %v532
          %537 = vst [vmem:[#allocation3 + $0xc] sm:$0xf] %v533
        $region44: #{smote_hg_forward.1} parent=39 // pred_fallthru
          _
        %v538 = vld [vmem:[%s272] sm:$0xf]
        %v539 = vld [vmem:[%s272 + $0x4] sm:$0xf]
        %v540 = vld [vmem:[#allocation3] sm:$0xf]
        %v541 = vld [vmem:[#allocation3 + $0x4] sm:$0xf]
        %v542 = vld [vmem:[#allocation3 + $0x8] sm:$0xf]
        %v543 = vld [vmem:[#allocation3 + $0xc] sm:$0xf]
        %v544 = vld [vmem:[%s7] sm:$0x1]
        %v546 = vperm.slane %v544, 0
        %v550 = vunpack.c.l.b16 %v538
        %v551 = vunpack.c.l.b16 %v539
        %v552 = vpack.c.b16 %v551, %v550
        %v557 = vunpack.c.l.b16 %v540
        %v558 = vunpack.c.l.b16 %v541
        %v559 = vunpack.c.l.b16 %v542
        %v560 = vunpack.c.l.b16 %v543
        %v561 = vpack.c.b16 %v558, %v557
        %v562 = vpack.c.b16 %v560, %v559
        %vm565 = vcmask 261120
        %v567 = vsel %vm565, %v552, 0
        %569 = vmatpush.bf16.msra.mxu0 0
        %570 = vmatpush.bf16.msra.mxu0 0
        %571 = vmatpush.bf16.msra.mxu0 0
        %572 = vmatpush.bf16.msra.mxu0 0
        %573 = vmatpush.bf16.msra.mxu0 0
        %574 = vmatpush.bf16.msra.mxu0 0
        %575 = vmatpush.bf16.msra.mxu0 %v562
        %576 = vmatpush.bf16.msra.mxu0 %v561
        %577 = vmatmul.bf16.gmra.mxu0 %v567
        %v578 = vpop.f32.mrf.mxu0
        %v579 = vadd.f32 %v546, %v578
        %v580 = vpop.f32.mrf.mxu0
        %v581 = vadd.f32 %v546, %v580
        %582 = vdwg.mxu0
        %v583 = vmax.f32 %v579, 0.0
        %v584 = vmax.f32 %v581, 0.0
        %585 = vst [vmem:[%s263] sm:$0xff] %v583
        %586 = vst [vmem:[%s263 + $0x8] sm:$0xff] %v584
        %s587 = sand.u32 %s174, 1
        %s588 = scalar_lea.sflag [#allocation11], %s587
        %s589 = sand.u32 %s174, 1
        %s590 = smul.addr %s589, 16
        %s591 = scalar_lea.vmem [#allocation10], %s590
        // Predicated region
        $region45: #{smote_hg_forward.1} parent=39 // pred_check
          %p592 = pneg %p184
        $region46: #{smote_hg_forward.1} parent=39 // pred_check_branch
          %594 = sbr.rel (%p592) target = $region48
        $region47: #{smote_hg_forward.1} parent=39 // pred_region
          %s595 = smul.u32 2, %s45
          %597 = vsyncadd %s588, 0
          %s598 = smul.addr %s44, 4
          %s599 = sadd.s32 %s595, %s598
          %s600 = smul.addr %s599, 8
          %s601 = scalar_lea.hbm %s8, %s600
          %s602 = sshll.u32 %s591, 4
          %s603 = int_to_ptr.vmem [resolvable:$true] %s602
          %s604 = sshll.u32 %s601, 4
          %s605 = int_to_ptr.hbm [resolvable:$true] %s604
          %610 = dma.vmem_to_hbm [thread:$0]  %s603, 256, %s605, %s588, 128, 128, 8
        $region48: #{smote_hg_forward.1} parent=39 // pred_fallthru
          _
      $region40: #{smote_hg_forward.1} parent=5 // pred_fallthru
        _
      %p611 = scmp.le.s32.totalorder 2, %s35
      // Predicated region
      $region49: #{smote_hg_forward.1} parent=5 // pred_check
        %p612 = pneg %p611
      $region50: #{smote_hg_forward.1} parent=5 // pred_check_branch
        %614 = sbr.rel (%p612) target = $region52
      $region51: #{smote_hg_forward.1} parent=5 // pred_region
        %s615 = ssub.s32 %s35, 2
        // Predicated region
        $region53: #{smote_hg_forward.1} parent=51 // pred_check
          %p616 = pneg %p190
        $region54: #{smote_hg_forward.1} parent=51 // pred_check_branch
          %618 = sbr.rel (%p616) target = $region56
        $region55: #{smote_hg_forward.1} parent=51 // pred_region
          %s619 = sand.u32 %s175, 1
          %s620 = scalar_lea.sflag [#allocation11], %s619
          %s621 = sand.u32 %s175, 1
          %s622 = smul.addr %s621, 16
          %s623 = scalar_lea.vmem [#allocation10], %s622
          %625 = dma.done %s620, 256
        $region56: #{smote_hg_forward.1} parent=51 // pred_fallthru
          _
      $region52: #{smote_hg_forward.1} parent=5 // pred_fallthru
        _
    $region6: #{smote_hg_forward.1} parent=1 // loop_footer
      %s39 = sadd.s32 1, %s35
    $region7: #{smote_hg_forward.1} parent=1 // loop_footer_branch
      %34 = sbr.rel target = $region3
    $region8: #{smote_hg_forward.1} parent=1 // loop_exit
      _
    %626 = vsyncpa [#allocation11], 1
    %s627 = scalar_lea.sflag [#allocation11], 1
    %628 = vsyncpa %s627, 1

</llo_original>
